<compile_context>
chip_gen: v5e
topology: v5e:2x2
jax: 0.10.0
libtpu: 0.0.40
codegen_flags: <defaults>
</compile_context>

<pallas_src>
import jax
import jax.numpy as jnp
import numpy as np
from jax.experimental import pallas as pl
from jax.experimental.pallas import tpu as pltpu

EPS = 1e-5          # nn.BatchNorm2d default eps
NEG_SLOPE = 0.01    # nn.LeakyReLU default negative_slope


def _pick_tile(total, target=1024):
    """Lane-tile size satisfying the (8,128) rule: full dim, or a multiple of
    128 that divides the dim."""
    if total <= target:
        return total
    t = (target // 128) * 128
    while t >= 128:
        if total % t == 0:
            return t
        t -= 128
    return total


# ---------------------------------------------------------------------------
# Pass 1: per-sample partial sums for BN batch statistics.
#   sx[n, c, 0]  = sum_t x[n, c, t]
#   g[n, c, c']  = sum_t x[n, c, t] * x[n, c', t]   (input-channel Gram, MXU)
# The BN mean/var of the 1x1-conv output are derived from these in the
# wrapper, so this pass does no [Cout, T] work at all.
# ---------------------------------------------------------------------------
def stats_kernel(x_ref, sx_ref, g_ref):
    @pl.when(pl.program_id(1) == 0)
    def _init():
        sx_ref[...] = jnp.zeros_like(sx_ref)
        g_ref[...] = jnp.zeros_like(g_ref)

    x = x_ref[0]                                          # [Cin, Tp]
    sx_ref[0] += jnp.sum(x, axis=1, keepdims=True)        # [Cin, 1]
    g_ref[0] += jax.lax.dot_general(                      # x @ x.T on the MXU
        x, x, (((1,), (1,)), ((), ())),
        preferred_element_type=jnp.float32)               # [Cin, Cin]


# ---------------------------------------------------------------------------
# Pass 2: fused 1x1 conv + BN affine (folded per-channel scale/shift) +
# LeakyReLU + AvgPool2d(2,2) as the mean of the 4 quadrant slabs.
# ---------------------------------------------------------------------------
def fused_kernel(xq_ref, wt_ref, scale_ref, shift_ref, o_ref):
    wt = wt_ref[...]                                      # [Cout, Cin]
    scale = scale_ref[...]                                # [Cout, 1]
    shift = shift_ref[...]                                # [Cout, 1]
    acc = jnp.zeros(o_ref.shape[1:], dtype=jnp.float32)   # [Cout, T]
    for q in range(4):                                    # unrolled
        y = jnp.dot(wt, xq_ref[0, q],
                    preferred_element_type=jnp.float32)   # [Cout, T]
        y = y * scale + shift                             # BN (folded, incl. bias)
        acc = acc + jnp.where(y > 0, y, NEG_SLOPE * y)    # LeakyReLU
    o_ref[0] = (0.25 * acc).astype(o_ref.dtype)           # AvgPool 2x2 / s2


@jax.jit
def downsample_1(x_nchw, w, b, gamma, beta):
    n, cin, h, wd = x_nchw.shape
    cout = w.shape[1]
    ho, wo = h // 2, wd // 2
    hw, hwo = h * wd, ho * wo
    m_total = n * hw                       # BN population size (N*H*W)

    wt = w.T                               # [Cout, Cin]

    # ---- pass 1: partial input sums / Gram (tiled reduction over H*W) ------
    x3 = x_nchw.reshape(n, cin, hw)        # pure reshape, channels on sublanes
    tp = _pick_tile(hw)
    sx_p, g_p = pl.pallas_call(
        stats_kernel,
        grid=(n, hw // tp),
        in_specs=[pl.BlockSpec((1, cin, tp), lambda ni, i: (ni, 0, i))],
        out_specs=[
            pl.BlockSpec((1, cin, 1), lambda ni, i: (ni, 0, 0)),
            pl.BlockSpec((1, cin, cin), lambda ni, i: (ni, 0, 0)),
        ],
        out_shape=[
            jax.ShapeDtypeStruct((n, cin, 1), jnp.float32),
            jax.ShapeDtypeStruct((n, cin, cin), jnp.float32),
        ],
        compiler_params=pltpu.CompilerParams(
            dimension_semantics=("parallel", "arbitrary")),
    )(x3)

    # ---- fold training-mode BN into per-channel scale/shift (tiny XLA) -----
    sx = jnp.sum(sx_p, axis=0)[:, 0]                       # [Cin]
    g = jnp.sum(g_p, axis=0)                               # [Cin, Cin]
    sxy = wt @ sx                                          # sum_t (Wx)_o
    quad = jnp.einsum("oc,cd,od->o", wt, g, wt)            # sum_t (Wx)_o^2
    mean_wx = sxy / m_total
    mean_y = mean_wx + b                                   # mean of conv output
    var = jnp.maximum(quad / m_total - mean_wx * mean_wx, 0.0)  # biased var
    scale = gamma * jax.lax.rsqrt(var + EPS)
    shift = (b - mean_y) * scale + beta                    # conv bias folded in

    # ---- quadrant view: xq[n, q, c, ho*Wo+wo] = x[n, c, 2ho+q//2, 2wo+q%2] --
    xq = (x_nchw.reshape(n, cin, ho, 2, wo, 2)
          .transpose(0, 3, 5, 1, 2, 4)
          .reshape(n, 4, cin, hwo))

    # ---- pass 2: fused conv + BN + LeakyReLU + AvgPool ----------------------
    t = _pick_tile(hwo)
    out = pl.pallas_call(
        fused_kernel,
        grid=(n, hwo // t),
        in_specs=[
            pl.BlockSpec((1, 4, cin, t), lambda ni, i: (ni, 0, 0, i)),
            pl.BlockSpec((cout, cin), lambda ni, i: (0, 0)),
            pl.BlockSpec((cout, 1), lambda ni, i: (0, 0)),
            pl.BlockSpec((cout, 1), lambda ni, i: (0, 0)),
        ],
        out_specs=pl.BlockSpec((1, cout, t), lambda ni, i: (ni, 0, i)),
        out_shape=jax.ShapeDtypeStruct((n, cout, hwo), jnp.float32),
        compiler_params=pltpu.CompilerParams(
            dimension_semantics=("parallel", "parallel")),
    )(xq, wt, scale.reshape(cout, 1), shift.reshape(cout, 1))

    # [N, Cout, Hout*Wout] -> NCHW with a pure reshape (no output transpose)
    return out.reshape(n, cout, ho, wo)


def _reference(x_nchw, w, b, gamma, beta):
    """Pure-JAX reference mirroring the PyTorch module (training-mode BN)."""
    n, cin, h, wd = x_nchw.shape
    cout = w.shape[1]
    xhwc = jnp.transpose(x_nchw, (0, 2, 3, 1))
    y = jnp.einsum("nhwc,cd->nhwd", xhwc, w) + b.reshape(1, 1, 1, cout)
    mean = jnp.mean(y, axis=(0, 1, 2), keepdims=True)
    var = jnp.mean((y - mean) ** 2, axis=(0, 1, 2), keepdims=True)
    y = (y - mean) * jax.lax.rsqrt(var + EPS) * gamma.reshape(1, 1, 1, cout) \
        + beta.reshape(1, 1, 1, cout)
    y = jnp.where(y > 0, y, NEG_SLOPE * y)
    y = y.reshape(n, h // 2, 2, wd // 2, 2, cout).mean(axis=(2, 4))
    return jnp.transpose(y, (0, 3, 1, 2))


if __name__ == "__main__":
    key = jax.random.PRNGKey(0)
    kx, kw, kb, kg, kbt = jax.random.split(key, 5)

    N, Cin, Cout, H, W = 2, 4, 8, 16, 16

    x = jax.random.normal(kx, (N, Cin, H, W), dtype=jnp.float32)
    # Conv2d(in, out, kernel_size=(1,1)) weight, stored here as [Cin, Cout].
    w = jax.random.normal(kw, (Cin, Cout), dtype=jnp.float32) * 0.1
    b = jax.random.normal(kb, (Cout,), dtype=jnp.float32) * 0.1
    # BatchNorm2d affine params (deterministic, non-trivial values).
    gamma = 1.0 + 0.1 * jax.random.normal(kg, (Cout,), dtype=jnp.float32)
    beta = 0.1 * jax.random.normal(kbt, (Cout,), dtype=jnp.float32)

    out = downsample_1(x, w, b, gamma, beta)
    jax.block_until_ready(out)

    ref = _reference(x, w, b, gamma, beta)
    assert out.shape == (N, Cout, H // 2, W // 2), out.shape
    np.testing.assert_allclose(np.asarray(out), np.asarray(ref),
                               rtol=1e-4, atol=1e-4)
    print("KERNEL_OK")
</pallas_src>

<mosaic_0001>
module attributes {stable_mosaic.version = 11 : i64} {
  func.func @stats_kernel(%arg0: i32, %arg1: i32, %arg2: memref<1x4x256xf32, #tpu.memory_space<vmem>>, %arg3: memref<1x4x1xf32, #tpu.memory_space<vmem>>, %arg4: memref<1x4x4xf32, #tpu.memory_space<vmem>>) attributes {dimension_semantics = [#tpu.dimension_semantics<parallel>, #tpu.dimension_semantics<arbitrary>], iteration_bounds = array<i64: 2, 1>, scalar_prefetch = 0 : i64, scratch_operands = 0 : i64, tpu.core_type = #tpu.core_type<tc>, window_params = [{transform_indices = @transform_0, window_bounds = array<i64: 1, 4, 256>}, {transform_indices = @transform_1, window_bounds = array<i64: 1, 4, 1>}, {transform_indices = @transform_2, window_bounds = array<i64: 1, 4, 4>}]} {
    %c0_i32 = arith.constant 0 : i32
    %0 = arith.cmpi eq, %arg1, %c0_i32 : i32
    %1 = arith.extui %0 : i1 to i32
    %c0_i32_0 = arith.constant 0 : i32
    %2 = arith.cmpi ne, %1, %c0_i32_0 : i32
    scf.if %2 {
      %cst_16 = arith.constant 0.000000e+00 : f32
      %20 = vector.broadcast %cst_16 : f32 to vector<1x4x1xf32>
      %c0_17 = arith.constant 0 : index
      %c0_18 = arith.constant 0 : index
      %c0_19 = arith.constant 0 : index
      %21 = vector.load %arg3[%c0_17, %c0_18, %c0_19] : memref<1x4x1xf32, #tpu.memory_space<vmem>>, vector<1x4x1xf32>
      tpu.vector_store %arg3[%c0_17, %c0_18, %c0_19], %20 {strides = array<i32>} : memref<1x4x1xf32, #tpu.memory_space<vmem>>, vector<1x4x1xf32>,
      %cst_20 = arith.constant 0.000000e+00 : f32
      %22 = vector.broadcast %cst_20 : f32 to vector<1x4x4xf32>
      %c0_21 = arith.constant 0 : index
      %c0_22 = arith.constant 0 : index
      %c0_23 = arith.constant 0 : index
      %23 = vector.load %arg4[%c0_21, %c0_22, %c0_23] : memref<1x4x4xf32, #tpu.memory_space<vmem>>, vector<1x4x4xf32>
      tpu.vector_store %arg4[%c0_21, %c0_22, %c0_23], %22 {strides = array<i32>} : memref<1x4x4xf32, #tpu.memory_space<vmem>>, vector<1x4x4xf32>,
    } else {
    }
    %c0 = arith.constant 0 : index
    %c0_1 = arith.constant 0 : index
    %c0_2 = arith.constant 0 : index
    %3 = vector.load %arg2[%c0, %c0_1, %c0_2] : memref<1x4x256xf32, #tpu.memory_space<vmem>>, vector<1x4x256xf32>
    %4 = vector.shape_cast %3 : vector<1x4x256xf32> to vector<4x256xf32>
    %c0_3 = arith.constant 0 : index
    %c0_4 = arith.constant 0 : index
    %c0_5 = arith.constant 0 : index
    %5 = vector.load %arg3[%c0_3, %c0_4, %c0_5] : memref<1x4x1xf32, #tpu.memory_space<vmem>>, vector<1x4x1xf32>
    %6 = vector.shape_cast %5 : vector<1x4x1xf32> to vector<4x1xf32>
    %cst = arith.constant dense<0.000000e+00> : vector<4xf32>
    %7 = vector.multi_reduction <add>, %4, %cst [1] : vector<4x256xf32> to vector<4xf32>
    %8 = vector.shape_cast %7 : vector<4xf32> to vector<4x1xf32>
    %9 = arith.addf %6, %8 : vector<4x1xf32>
    %c0_6 = arith.constant 0 : index
    %c0_7 = arith.constant 0 : index
    %c0_8 = arith.constant 0 : index
    %10 = vector.load %arg3[%c0_6, %c0_7, %c0_8] : memref<1x4x1xf32, #tpu.memory_space<vmem>>, vector<1x4x1xf32>
    %11 = vector.shape_cast %10 : vector<1x4x1xf32> to vector<4x1xf32>
    %12 = vector.shape_cast %9 : vector<4x1xf32> to vector<1x4x1xf32>
    tpu.vector_store %arg3[%c0_6, %c0_7, %c0_8], %12 {strides = array<i32>} : memref<1x4x1xf32, #tpu.memory_space<vmem>>, vector<1x4x1xf32>,
    %c0_9 = arith.constant 0 : index
    %c0_10 = arith.constant 0 : index
    %c0_11 = arith.constant 0 : index
    %13 = vector.load %arg4[%c0_9, %c0_10, %c0_11] : memref<1x4x4xf32, #tpu.memory_space<vmem>>, vector<1x4x4xf32>
    %14 = vector.shape_cast %13 : vector<1x4x4xf32> to vector<4x4xf32>
    %cst_12 = arith.constant dense<0.000000e+00> : vector<4x4xf32>
    %15 = tpu.matmul %4, %4, %cst_12 {dimension_numbers = #tpu.dot_dimension_numbers<[1], [1], [0], [0], [0, 0, 1, 0], [], []>} : vector<4x256xf32>, vector<4x256xf32>, vector<4x4xf32> -> vector<4x4xf32>
    %16 = arith.addf %14, %15 : vector<4x4xf32>
    %c0_13 = arith.constant 0 : index
    %c0_14 = arith.constant 0 : index
    %c0_15 = arith.constant 0 : index
    %17 = vector.load %arg4[%c0_13, %c0_14, %c0_15] : memref<1x4x4xf32, #tpu.memory_space<vmem>>, vector<1x4x4xf32>
    %18 = vector.shape_cast %17 : vector<1x4x4xf32> to vector<4x4xf32>
    %19 = vector.shape_cast %16 : vector<4x4xf32> to vector<1x4x4xf32>
    tpu.vector_store %arg4[%c0_13, %c0_14, %c0_15], %19 {strides = array<i32>} : memref<1x4x4xf32, #tpu.memory_space<vmem>>, vector<1x4x4xf32>,
    return
  }
  func.func @transform_0(%arg0: i32, %arg1: i32) -> (i32, i32, i32) {
    %c0_i32 = arith.constant 0 : i32
    %c0_i32_0 = arith.constant 0 : i32
    return %arg0, %c0_i32, %arg1 : i32, i32, i32
  }
  func.func @transform_1(%arg0: i32, %arg1: i32) -> (i32, i32, i32) {
    %c0_i32 = arith.constant 0 : i32
    %c0_i32_0 = arith.constant 0 : i32
    %c0_i32_1 = arith.constant 0 : i32
    return %arg0, %c0_i32, %c0_i32_0 : i32, i32, i32
  }
  func.func @transform_2(%arg0: i32, %arg1: i32) -> (i32, i32, i32) {
    %c0_i32 = arith.constant 0 : i32
    %c0_i32_0 = arith.constant 0 : i32
    %c0_i32_1 = arith.constant 0 : i32
    return %arg0, %c0_i32, %c0_i32_0 : i32, i32, i32
  }
}

module attributes {stable_mosaic.version = 11 : i64} {
  func.func @fused_kernel(%arg0: i32, %arg1: i32, %arg2: memref<1x4x4x64xf32, #tpu.memory_space<vmem>>, %arg3: memref<8x4xf32, #tpu.memory_space<vmem>>, %arg4: memref<8x1xf32, #tpu.memory_space<vmem>>, %arg5: memref<8x1xf32, #tpu.memory_space<vmem>>, %arg6: memref<1x8x64xf32, #tpu.memory_space<vmem>>) attributes {dimension_semantics = [#tpu.dimension_semantics<parallel>, #tpu.dimension_semantics<parallel>], iteration_bounds = array<i64: 2, 1>, scalar_prefetch = 0 : i64, scratch_operands = 0 : i64, tpu.core_type = #tpu.core_type<tc>, window_params = [{transform_indices = @transform_0, window_bounds = array<i64: 1, 4, 4, 64>}, {pipeline_mode = #tpu.pipeline_mode<synchronous>, transform_indices = @transform_1, window_bounds = array<i64: 8, 4>}, {pipeline_mode = #tpu.pipeline_mode<synchronous>, transform_indices = @transform_2, window_bounds = array<i64: 8, 1>}, {pipeline_mode = #tpu.pipeline_mode<synchronous>, transform_indices = @transform_3, window_bounds = array<i64: 8, 1>}, {transform_indices = @transform_4, window_bounds = array<i64: 1, 8, 64>}]} {
    %c0 = arith.constant 0 : index
    %c0_0 = arith.constant 0 : index
    %0 = vector.load %arg3[%c0, %c0_0] : memref<8x4xf32, #tpu.memory_space<vmem>>, vector<8x4xf32>
    %c0_1 = arith.constant 0 : index
    %c0_2 = arith.constant 0 : index
    %1 = vector.load %arg4[%c0_1, %c0_2] : memref<8x1xf32, #tpu.memory_space<vmem>>, vector<8x1xf32>
    %c0_3 = arith.constant 0 : index
    %c0_4 = arith.constant 0 : index
    %2 = vector.load %arg5[%c0_3, %c0_4] : memref<8x1xf32, #tpu.memory_space<vmem>>, vector<8x1xf32>
    %cst = arith.constant 0.000000e+00 : f32
    %3 = vector.broadcast %cst : f32 to vector<8x64xf32>
    %c0_5 = arith.constant 0 : index
    %c0_6 = arith.constant 0 : index
    %c0_7 = arith.constant 0 : index
    %c0_8 = arith.constant 0 : index
    %4 = vector.load %arg2[%c0_5, %c0_6, %c0_7, %c0_8] : memref<1x4x4x64xf32, #tpu.memory_space<vmem>>, vector<1x1x4x64xf32>
    %5 = vector.shape_cast %4 : vector<1x1x4x64xf32> to vector<4x64xf32>
    %cst_9 = arith.constant dense<0.000000e+00> : vector<8x64xf32>
    %6 = tpu.matmul %0, %5, %cst_9 {dimension_numbers = #tpu.dot_dimension_numbers<[1], [0], [0], [1], [0, 0, 1, 1], [], []>} : vector<8x4xf32>, vector<4x64xf32>, vector<8x64xf32> -> vector<8x64xf32>
    %7 = vector.broadcast %1 : vector<8x1xf32> to vector<8x64xf32>
    %8 = arith.mulf %6, %7 : vector<8x64xf32>
    %9 = vector.broadcast %2 : vector<8x1xf32> to vector<8x64xf32>
    %10 = arith.addf %8, %9 : vector<8x64xf32>
    %cst_10 = arith.constant 0.000000e+00 : f32
    %11 = vector.broadcast %cst_10 : f32 to vector<8x64xf32>
    %12 = arith.cmpf ogt, %10, %11 : vector<8x64xf32>
    %cst_11 = arith.constant 0.00999999977 : f32
    %13 = vector.broadcast %cst_11 : f32 to vector<8x64xf32>
    %14 = arith.mulf %13, %10 : vector<8x64xf32>
    %15 = arith.select %12, %10, %14 : vector<8x64xi1>, vector<8x64xf32>
    %16 = arith.addf %3, %15 : vector<8x64xf32>
    %c0_12 = arith.constant 0 : index
    %c1 = arith.constant 1 : index
    %c0_13 = arith.constant 0 : index
    %c0_14 = arith.constant 0 : index
    %17 = vector.load %arg2[%c0_12, %c1, %c0_13, %c0_14] : memref<1x4x4x64xf32, #tpu.memory_space<vmem>>, vector<1x1x4x64xf32>
    %18 = vector.shape_cast %17 : vector<1x1x4x64xf32> to vector<4x64xf32>
    %cst_15 = arith.constant dense<0.000000e+00> : vector<8x64xf32>
    %19 = tpu.matmul %0, %18, %cst_15 {dimension_numbers = #tpu.dot_dimension_numbers<[1], [0], [0], [1], [0, 0, 1, 1], [], []>} : vector<8x4xf32>, vector<4x64xf32>, vector<8x64xf32> -> vector<8x64xf32>
    %20 = vector.broadcast %1 : vector<8x1xf32> to vector<8x64xf32>
    %21 = arith.mulf %19, %20 : vector<8x64xf32>
    %22 = vector.broadcast %2 : vector<8x1xf32> to vector<8x64xf32>
    %23 = arith.addf %21, %22 : vector<8x64xf32>
    %cst_16 = arith.constant 0.000000e+00 : f32
    %24 = vector.broadcast %cst_16 : f32 to vector<8x64xf32>
    %25 = arith.cmpf ogt, %23, %24 : vector<8x64xf32>
    %cst_17 = arith.constant 0.00999999977 : f32
    %26 = vector.broadcast %cst_17 : f32 to vector<8x64xf32>
    %27 = arith.mulf %26, %23 : vector<8x64xf32>
    %28 = arith.select %25, %23, %27 : vector<8x64xi1>, vector<8x64xf32>
    %29 = arith.addf %16, %28 : vector<8x64xf32>
    %c0_18 = arith.constant 0 : index
    %c2 = arith.constant 2 : index
    %c0_19 = arith.constant 0 : index
    %c0_20 = arith.constant 0 : index
    %30 = vector.load %arg2[%c0_18, %c2, %c0_19, %c0_20] : memref<1x4x4x64xf32, #tpu.memory_space<vmem>>, vector<1x1x4x64xf32>
    %31 = vector.shape_cast %30 : vector<1x1x4x64xf32> to vector<4x64xf32>
    %cst_21 = arith.constant dense<0.000000e+00> : vector<8x64xf32>
    %32 = tpu.matmul %0, %31, %cst_21 {dimension_numbers = #tpu.dot_dimension_numbers<[1], [0], [0], [1], [0, 0, 1, 1], [], []>} : vector<8x4xf32>, vector<4x64xf32>, vector<8x64xf32> -> vector<8x64xf32>
    %33 = vector.broadcast %1 : vector<8x1xf32> to vector<8x64xf32>
    %34 = arith.mulf %32, %33 : vector<8x64xf32>
    %35 = vector.broadcast %2 : vector<8x1xf32> to vector<8x64xf32>
    %36 = arith.addf %34, %35 : vector<8x64xf32>
    %cst_22 = arith.constant 0.000000e+00 : f32
    %37 = vector.broadcast %cst_22 : f32 to vector<8x64xf32>
    %38 = arith.cmpf ogt, %36, %37 : vector<8x64xf32>
    %cst_23 = arith.constant 0.00999999977 : f32
    %39 = vector.broadcast %cst_23 : f32 to vector<8x64xf32>
    %40 = arith.mulf %39, %36 : vector<8x64xf32>
    %41 = arith.select %38, %36, %40 : vector<8x64xi1>, vector<8x64xf32>
    %42 = arith.addf %29, %41 : vector<8x64xf32>
    %c0_24 = arith.constant 0 : index
    %c3 = arith.constant 3 : index
    %c0_25 = arith.constant 0 : index
    %c0_26 = arith.constant 0 : index
    %43 = vector.load %arg2[%c0_24, %c3, %c0_25, %c0_26] : memref<1x4x4x64xf32, #tpu.memory_space<vmem>>, vector<1x1x4x64xf32>
    %44 = vector.shape_cast %43 : vector<1x1x4x64xf32> to vector<4x64xf32>
    %cst_27 = arith.constant dense<0.000000e+00> : vector<8x64xf32>
    %45 = tpu.matmul %0, %44, %cst_27 {dimension_numbers = #tpu.dot_dimension_numbers<[1], [0], [0], [1], [0, 0, 1, 1], [], []>} : vector<8x4xf32>, vector<4x64xf32>, vector<8x64xf32> -> vector<8x64xf32>
    %46 = vector.broadcast %1 : vector<8x1xf32> to vector<8x64xf32>
    %47 = arith.mulf %45, %46 : vector<8x64xf32>
    %48 = vector.broadcast %2 : vector<8x1xf32> to vector<8x64xf32>
    %49 = arith.addf %47, %48 : vector<8x64xf32>
    %cst_28 = arith.constant 0.000000e+00 : f32
    %50 = vector.broadcast %cst_28 : f32 to vector<8x64xf32>
    %51 = arith.cmpf ogt, %49, %50 : vector<8x64xf32>
    %cst_29 = arith.constant 0.00999999977 : f32
    %52 = vector.broadcast %cst_29 : f32 to vector<8x64xf32>
    %53 = arith.mulf %52, %49 : vector<8x64xf32>
    %54 = arith.select %51, %49, %53 : vector<8x64xi1>, vector<8x64xf32>
    %55 = arith.addf %42, %54 : vector<8x64xf32>
    %cst_30 = arith.constant 2.500000e-01 : f32
    %56 = vector.broadcast %cst_30 : f32 to vector<8x64xf32>
    %57 = arith.mulf %56, %55 : vector<8x64xf32>
    %c0_31 = arith.constant 0 : index
    %c0_32 = arith.constant 0 : index
    %c0_33 = arith.constant 0 : index
    %58 = vector.load %arg6[%c0_31, %c0_32, %c0_33] : memref<1x8x64xf32, #tpu.memory_space<vmem>>, vector<1x8x64xf32>
    %59 = vector.shape_cast %58 : vector<1x8x64xf32> to vector<8x64xf32>
    %60 = vector.shape_cast %57 : vector<8x64xf32> to vector<1x8x64xf32>
    tpu.vector_store %arg6[%c0_31, %c0_32, %c0_33], %60 {strides = array<i32>} : memref<1x8x64xf32, #tpu.memory_space<vmem>>, vector<1x8x64xf32>,
    return
  }
  func.func @transform_0(%arg0: i32, %arg1: i32) -> (i32, i32, i32, i32) {
    %c0_i32 = arith.constant 0 : i32
    %c0_i32_0 = arith.constant 0 : i32
    %c0_i32_1 = arith.constant 0 : i32
    return %arg0, %c0_i32, %c0_i32_0, %arg1 : i32, i32, i32, i32
  }
  func.func @transform_1(%arg0: i32, %arg1: i32) -> (i32, i32) {
    %c0_i32 = arith.constant 0 : i32
    %c0_i32_0 = arith.constant 0 : i32
    %c0_i32_1 = arith.constant 0 : i32
    return %c0_i32, %c0_i32_0 : i32, i32
  }
  func.func @transform_2(%arg0: i32, %arg1: i32) -> (i32, i32) {
    %c0_i32 = arith.constant 0 : i32
    %c0_i32_0 = arith.constant 0 : i32
    %c0_i32_1 = arith.constant 0 : i32
    return %c0_i32, %c0_i32_0 : i32, i32
  }
  func.func @transform_3(%arg0: i32, %arg1: i32) -> (i32, i32) {
    %c0_i32 = arith.constant 0 : i32
    %c0_i32_0 = arith.constant 0 : i32
    %c0_i32_1 = arith.constant 0 : i32
    return %c0_i32, %c0_i32_0 : i32, i32
  }
  func.func @transform_4(%arg0: i32, %arg1: i32) -> (i32, i32, i32) {
    %c0_i32 = arith.constant 0 : i32
    %c0_i32_0 = arith.constant 0 : i32
    return %arg0, %c0_i32, %arg1 : i32, i32, i32
  }
}

</mosaic_0001>

<llo_original>
// kernel: downsample_1.3
$region0: #{downsample_1.3}
  #allocation0 [shape = 'u32[]', space=smem, size = 0x4, offset = 0x4, fixed_abs, tag = 'smem constant byte address 0x4 - core index']
  #allocation1 [shape = 'u32[72,128]{1,0:T(1,128)}', space=vmem, size = 0x9000, scoped, tag = 'internal scratch']
  %s0 = inlined_call_operand.vmem [shape: f32[2,4,4,64], index: 0, kind: input, shape index: {}]
  %s1 = inlined_call_operand.vmem [shape: f32[8,4], index: 1, kind: input, shape index: {}]
  %s2 = inlined_call_operand.vmem [shape: f32[8,1], index: 2, kind: input, shape index: {}]
  %s3 = inlined_call_operand.vmem [shape: f32[8,1], index: 3, kind: input, shape index: {}]
  %s4 = inlined_call_operand.vmem [shape: f32[2,8,64], index: 4, kind: output, shape index: {}]
  %s5 = sld [smem:[#allocation0]]
  $region49: #{downsample_1.3} parent=0
    _
  %s7 = ssub.s32 1, %s5
  %s8 = scalar_select 0, %s7, %s5
  loop: start=0, step=1, limit=4
  $region2: #{downsample_1.3} parent=0 // loop_pre_header
    _
  $region3: #{downsample_1.3} parent=0 // loop_header
    %s10 = sphi 0, %s14
    %p11 = scmp.ge.s32.totalorder %s10, 4
    %s17 = sphi 0, %s29
    %s18 = sphi 0, %s25
    %s19 = sphi 0, %s17
    %s20 = sphi 0, %s18
    %s21 = sphi 0, %s19
    %s22 = sphi 0, %s20
    %s34 = sphi 0, %s36
    %s37 = sphi 0, %s34
    %s38 = sphi 0, %s37
    %s54 = sphi 0, %s38
    %s58 = sphi 0, %s58
    %s60 = sphi 0, %s58
    %s61 = sphi 0, %s60
    %s75 = sphi 0, %s61
    %s79 = sphi 0, %s79
    %s81 = sphi 0, %s79
    %s82 = sphi 0, %s81
    %s96 = sphi 0, %s82
    %s100 = sphi 0, %s100
    %s102 = sphi 0, %s100
    %s103 = sphi 0, %s102
    %s117 = sphi 0, %s103
    %s125 = sphi 0, %s127
    %s128 = sphi 0, %s125
    %s129 = sphi 0, %s128
    %s145 = sphi 0, %s129
  $region4: #{downsample_1.3} parent=0 // loop_header_branch
    %13 = sbr.rel (%p11) target = $region8
  $region5: #{downsample_1.3} parent=0 // loop_body
    %s15 = ssub.s32 %s10, 1
    %s16 = ssub.s32 %s10, 2
    %s23 = sadd.s32 1, %s18
    %p24 = scmp.ge.s32.totalorder %s23, 1
    %s25 = scalar_select %p24, 0, %s23
    %s26 = sadd.s32 1, %s17
    %s27 = scalar_select %p24, %s26, %s17
    %p28 = scmp.ge.s32.totalorder %s27, 2
    %s29 = scalar_select %p28, 0, %s27
    %s30 = ssub.s32 %s17, %s29
    %s31 = ssub.s32 %s18, %s25
    %s32 = sor.u32 %s30, %s31
    %p33 = scmp.eq.s32.totalorder %s32, 0
    %s35 = sadd.s32 %s34, 1
    %s36 = scalar_select %p33, %s34, %s35
    %p39 = pneg %p33
    %p40 = scmp.eq.s32.totalorder %s10, 1
    %p41 = por %p39, %p40
    %p42 = scmp.ne.s32.totalorder %s34, %s37
    %p43 = scmp.eq.s32.totalorder %s10, 0
    %p44 = por %p42, %p43
    %p45 = scmp.ne.s32.totalorder %s34, %s37
    %p46 = scmp.eq.s32.totalorder %s15, 1
    %p47 = por %p45, %p46
    %p48 = scmp.ne.s32.totalorder %s37, %s38
    %p49 = scmp.eq.s32.totalorder %s15, 0
    %p50 = por %p48, %p49
    %p51 = scmp.ne.s32.totalorder %s37, %s38
    %p52 = scmp.eq.s32.totalorder %s16, 1
    %p53 = por %p51, %p52
    %p55 = scmp.ne.s32.totalorder %s38, %s54
    %p56 = scmp.eq.s32.totalorder %s16, 0
    %p57 = por %p55, %p56
    %s59 = sadd.s32 %s58, 1
    %p62 = scmp.eq.s32.totalorder %s10, 1
    %p63 = scmp.ne.s32.totalorder %s58, %s60
    %p64 = scmp.eq.s32.totalorder %s10, 0
    %p65 = por %p63, %p64
    %p66 = scmp.ne.s32.totalorder %s58, %s60
    %p67 = scmp.eq.s32.totalorder %s15, 1
    %p68 = por %p66, %p67
    %p69 = scmp.ne.s32.totalorder %s60, %s61
    %p70 = scmp.eq.s32.totalorder %s15, 0
    %p71 = por %p69, %p70
    %p72 = scmp.ne.s32.totalorder %s60, %s61
    %p73 = scmp.eq.s32.totalorder %s16, 1
    %p74 = por %p72, %p73
    %p76 = scmp.ne.s32.totalorder %s61, %s75
    %p77 = scmp.eq.s32.totalorder %s16, 0
    %p78 = por %p76, %p77
    %s80 = sadd.s32 %s79, 1
    %p83 = scmp.eq.s32.totalorder %s10, 1
    %p84 = scmp.ne.s32.totalorder %s79, %s81
    %p85 = scmp.eq.s32.totalorder %s10, 0
    %p86 = por %p84, %p85
    %p87 = scmp.ne.s32.totalorder %s79, %s81
    %p88 = scmp.eq.s32.totalorder %s15, 1
    %p89 = por %p87, %p88
    %p90 = scmp.ne.s32.totalorder %s81, %s82
    %p91 = scmp.eq.s32.totalorder %s15, 0
    %p92 = por %p90, %p91
    %p93 = scmp.ne.s32.totalorder %s81, %s82
    %p94 = scmp.eq.s32.totalorder %s16, 1
    %p95 = por %p93, %p94
    %p97 = scmp.ne.s32.totalorder %s82, %s96
    %p98 = scmp.eq.s32.totalorder %s16, 0
    %p99 = por %p97, %p98
    %s101 = sadd.s32 %s100, 1
    %p104 = scmp.eq.s32.totalorder %s10, 1
    %p105 = scmp.ne.s32.totalorder %s100, %s102
    %p106 = scmp.eq.s32.totalorder %s10, 0
    %p107 = por %p105, %p106
    %p108 = scmp.ne.s32.totalorder %s100, %s102
    %p109 = scmp.eq.s32.totalorder %s15, 1
    %p110 = por %p108, %p109
    %p111 = scmp.ne.s32.totalorder %s102, %s103
    %p112 = scmp.eq.s32.totalorder %s15, 0
    %p113 = por %p111, %p112
    %p114 = scmp.ne.s32.totalorder %s102, %s103
    %p115 = scmp.eq.s32.totalorder %s16, 1
    %p116 = por %p114, %p115
    %p118 = scmp.ne.s32.totalorder %s103, %s117
    %p119 = scmp.eq.s32.totalorder %s16, 0
    %p120 = por %p118, %p119
    %s121 = ssub.s32 %s17, %s29
    %s122 = ssub.s32 %s18, %s25
    %s123 = sor.u32 %s121, %s122
    %p124 = scmp.eq.s32.totalorder %s123, 0
    %s126 = sadd.s32 %s125, 1
    %s127 = scalar_select %p124, %s125, %s126
    %p130 = pneg %p124
    %p131 = scmp.eq.s32.totalorder %s10, 1
    %p132 = por %p130, %p131
    %p133 = scmp.ne.s32.totalorder %s125, %s128
    %p134 = scmp.eq.s32.totalorder %s10, 0
    %p135 = por %p133, %p134
    %p136 = scmp.ne.s32.totalorder %s125, %s128
    %p137 = scmp.eq.s32.totalorder %s15, 1
    %p138 = por %p136, %p137
    %p139 = scmp.ne.s32.totalorder %s128, %s129
    %p140 = scmp.eq.s32.totalorder %s15, 0
    %p141 = por %p139, %p140
    %p142 = scmp.ne.s32.totalorder %s128, %s129
    %p143 = scmp.eq.s32.totalorder %s16, 1
    %p144 = por %p142, %p143
    %p146 = scmp.ne.s32.totalorder %s129, %s145
    %p147 = scmp.eq.s32.totalorder %s16, 0
    %p148 = por %p146, %p147
    %p149 = scmp.le.s32.totalorder 1, %s10
    %p150 = scmp.lt.s32.totalorder %s10, 3
    %p151 = pnand %p149, %p150
    %p152 = pneg %p151
    // Predicated region
    $region9: #{downsample_1.3} parent=5 // pred_check
      _
    $region10: #{downsample_1.3} parent=5 // pred_check_branch
      %154 = sbr.rel (%p151) target = $region12
    $region11: #{downsample_1.3} parent=5 // pred_region
      %s155 = ssub.s32 %s10, 1
      // Predicated region
      $region13: #{downsample_1.3} parent=11 // pred_check
        %p156 = pneg %p71
      $region14: #{downsample_1.3} parent=11 // pred_check_branch
        %158 = sbr.rel (%p156) target = $region16
      $region15: #{downsample_1.3} parent=11 // pred_region
        _
      $region16: #{downsample_1.3} parent=11 // pred_fallthru
        _
      // Predicated region
      $region17: #{downsample_1.3} parent=11 // pred_check
        %p159 = pneg %p92
      $region18: #{downsample_1.3} parent=11 // pred_check_branch
        %161 = sbr.rel (%p159) target = $region20
      $region19: #{downsample_1.3} parent=11 // pred_region
        _
      $region20: #{downsample_1.3} parent=11 // pred_fallthru
        _
      // Predicated region
      $region21: #{downsample_1.3} parent=11 // pred_check
        %p162 = pneg %p113
      $region22: #{downsample_1.3} parent=11 // pred_check_branch
        %164 = sbr.rel (%p162) target = $region24
      $region23: #{downsample_1.3} parent=11 // pred_region
        _
      $region24: #{downsample_1.3} parent=11 // pred_fallthru
        _
    $region12: #{downsample_1.3} parent=5 // pred_fallthru
      _
    %p165 = scmp.lt.s32.totalorder %s10, 2
    // Predicated region
    $region25: #{downsample_1.3} parent=5 // pred_check
      %p166 = pneg %p165
    $region26: #{downsample_1.3} parent=5 // pred_check_branch
      %168 = sbr.rel (%p166) target = $region28
    $region27: #{downsample_1.3} parent=5 // pred_region
      // Predicated region
      $region29: #{downsample_1.3} parent=27 // pred_check
        %p169 = pneg %p44
      $region30: #{downsample_1.3} parent=27 // pred_check_branch
        %171 = sbr.rel (%p169) target = $region32
      $region31: #{downsample_1.3} parent=27 // pred_region
        %p172 = scmp.lt.s32.totalorder %s17, 1
        %s173 = scalar_select %p172, %s17, 1
        %p174 = scmp.lt.s32.totalorder %s18, 0
        %s175 = scalar_select %p174, %s18, 0
        %s176 = smul.addr %s173, 4
        %s177 = sadd.s32 %s175, %s176
        %s178 = smul.addr %s177, 4
        %s179 = scalar_lea.vmem %s0, %s178
      $region32: #{downsample_1.3} parent=27 // pred_fallthru
        _
    $region28: #{downsample_1.3} parent=5 // pred_fallthru
      _
    %p180 = scmp.le.s32.totalorder 1, %s10
    %p181 = scmp.lt.s32.totalorder %s10, 3
    %p182 = pnand %p180, %p181
    %p183 = pneg %p182
    // Predicated region
    $region33: #{downsample_1.3} parent=5 // pred_check
      _
    $region34: #{downsample_1.3} parent=5 // pred_check_branch
      %185 = sbr.rel (%p182) target = $region36
    $region35: #{downsample_1.3} parent=5 // pred_region
      %s186 = ssub.s32 %s10, 1
      %p187 = scmp.lt.s32.totalorder %s19, 1
      %s188 = scalar_select %p187, %s19, 1
      %p189 = scmp.lt.s32.totalorder %s20, 0
      %s190 = scalar_select %p189, %s20, 0
      %s191 = smul.addr %s188, 4
      %s192 = sadd.s32 %s190, %s191
      %s193 = smul.addr %s192, 4
      %s194 = scalar_lea.vmem %s0, %s193
      %p195 = pneg %p50
      %p196 = pneg %p47
      %p197 = pneg %p71
      %p198 = pneg %p68
      %p199 = pneg %p92
      %p200 = pneg %p89
      %p201 = pneg %p113
      %p202 = pneg %p110
      %p203 = pneg %p141
      %p204 = pneg %p138
      %p205 = scmp.lt.s32.totalorder %s19, 1
      %s206 = scalar_select %p205, %s19, 1
      %p207 = scmp.lt.s32.totalorder %s20, 0
      %s208 = scalar_select %p207, %s20, 0
      %s209 = sadd.s32 %s208, %s206
      %s210 = smul.addr %s209, 8
      %s211 = scalar_lea.vmem %s4, %s210
      %p212 = scmp.lt.s32.totalorder %s19, 1
      %s213 = scalar_select %p212, %s19, 1
      %p214 = scmp.lt.s32.totalorder %s20, 0
      %s215 = scalar_select %p214, %s20, 0
      %s216 = smul.addr %s213, 4
      %s217 = sadd.s32 %s215, %s216
      %s218 = smul.addr %s217, 4
      %s219 = scalar_lea.vmem %s0, %s218
      %p220 = scmp.lt.s32.totalorder %s19, 1
      %s221 = scalar_select %p220, %s19, 1
      %p222 = scmp.lt.s32.totalorder %s20, 0
      %s223 = scalar_select %p222, %s20, 0
      %s224 = sadd.s32 %s223, %s221
      %s225 = smul.addr %s224, 8
      %s226 = scalar_lea.vmem %s4, %s225
      %v227 = vld [vmem:[%s1] sm:$0xff]
      %v228 = vld [vmem:[%s2] sm:$0xff]
      %v229 = vld [vmem:[%s3] sm:$0xff]
      %v230 = vld [vmem:[%s219] sm:$0xf]
      %vm231 = vcmask 31744
      %v233 = vsel %vm231, %v227, 0
      %vm235 = vcmask 1043456
      %v237 = vsel %vm235, %v230, 0
      %239 = vmatpush.msra.mxu0 0.0
      %240 = vmatpush.msra.mxu0 0.0
      %241 = vmatpush.msra.mxu0 0.0
      %242 = vmatpush.msra.mxu0 0.0
      %243 = vmatpush.msra.mxu0 0.0
      %244 = vmatpush.msra.mxu0 0.0
      %245 = vmatpush.msra.mxu0 0.0
      %246 = vmatpush.msra.mxu0 0.0
      %247 = vmatpush.msra.mxu0 0.0
      %248 = vmatpush.msra.mxu0 0.0
      %249 = vmatpush.msra.mxu0 0.0
      %250 = vmatpush.msra.mxu0 0.0
      %251 = vmatpush.msra.mxu0 0.0
      %252 = vmatpush.msra.mxu0 0.0
      %253 = vmatpush.msra.mxu0 0.0
      %254 = vmatpush.msra.mxu0 %v237
      %255 = vmatmul.f32.gmra.mxu0 %v233
      %v256 = vpop.f32.mrf.mxu0
      %v257 = vadd.f32 0.0, %v256
      %258 = vdwg.mxu0
      %260 = vset.pattern.permute.xlu0 0
      %261 = vperm.xlu0 %260, %v228
      %v262 = vpop.permute.xlu0 %261
      %v264 = vmul.f32 %v257, %v262
      %266 = vset.pattern.permute.xlu0 0
      %267 = vperm.xlu0 %266, %v229
      %v268 = vpop.permute.xlu0 %267
      %v270 = vadd.f32 %v264, %v268
      %vm271 = vcmp.gt.f32.partialorder %v270, 0.0
      %v272 = vmul.f32 %v270, 0.01
      %v273 = vsel %vm271, %v270, %v272
      %v274 = vadd.f32 %v273, 0.0
      %s275 = scalar_lea.vmem %s219, 4
      %v276 = vld [vmem:[%s275] sm:$0xf]
      %v278 = vsel %vm235, %v276, 0
      %280 = vmatpush.msra.mxu0 0.0
      %281 = vmatpush.msra.mxu0 0.0
      %282 = vmatpush.msra.mxu0 0.0
      %283 = vmatpush.msra.mxu0 0.0
      %284 = vmatpush.msra.mxu0 0.0
      %285 = vmatpush.msra.mxu0 0.0
      %286 = vmatpush.msra.mxu0 0.0
      %287 = vmatpush.msra.mxu0 0.0
      %288 = vmatpush.msra.mxu0 0.0
      %289 = vmatpush.msra.mxu0 0.0
      %290 = vmatpush.msra.mxu0 0.0
      %291 = vmatpush.msra.mxu0 0.0
      %292 = vmatpush.msra.mxu0 0.0
      %293 = vmatpush.msra.mxu0 0.0
      %294 = vmatpush.msra.mxu0 0.0
      %295 = vmatpush.msra.mxu0 %v278
      %296 = vmatmul.f32.gmra.mxu0 %v233
      %v297 = vpop.f32.mrf.mxu0
      %v298 = vadd.f32 0.0, %v297
      %299 = vdwg.mxu0
      %v300 = vmul.f32 %v298, %v262
      %v301 = vadd.f32 %v300, %v268
      %vm302 = vcmp.gt.f32.partialorder %v301, 0.0
      %v303 = vmul.f32 %v301, 0.01
      %v304 = vsel %vm302, %v301, %v303
      %v305 = vadd.f32 %v274, %v304
      %s306 = scalar_lea.vmem %s219, 8
      %v307 = vld [vmem:[%s306] sm:$0xf]
      %v309 = vsel %vm235, %v307, 0
      %311 = vmatpush.msra.mxu0 0.0
      %312 = vmatpush.msra.mxu0 0.0
      %313 = vmatpush.msra.mxu0 0.0
      %314 = vmatpush.msra.mxu0 0.0
      %315 = vmatpush.msra.mxu0 0.0
      %316 = vmatpush.msra.mxu0 0.0
      %317 = vmatpush.msra.mxu0 0.0
      %318 = vmatpush.msra.mxu0 0.0
      %319 = vmatpush.msra.mxu0 0.0
      %320 = vmatpush.msra.mxu0 0.0
      %321 = vmatpush.msra.mxu0 0.0
      %322 = vmatpush.msra.mxu0 0.0
      %323 = vmatpush.msra.mxu0 0.0
      %324 = vmatpush.msra.mxu0 0.0
      %325 = vmatpush.msra.mxu0 0.0
      %326 = vmatpush.msra.mxu0 %v309
      %327 = vmatmul.f32.gmra.mxu0 %v233
      %v328 = vpop.f32.mrf.mxu0
      %v329 = vadd.f32 0.0, %v328
      %330 = vdwg.mxu0
      %v331 = vmul.f32 %v329, %v262
      %v332 = vadd.f32 %v331, %v268
      %vm333 = vcmp.gt.f32.partialorder %v332, 0.0
      %v334 = vmul.f32 %v332, 0.01
      %v335 = vsel %vm333, %v332, %v334
      %v336 = vadd.f32 %v305, %v335
      %s337 = scalar_lea.vmem %s219, 12
      %v338 = vld [vmem:[%s337] sm:$0xf]
      %v340 = vsel %vm235, %v338, 0
      %342 = vmatpush.msra.mxu0 0.0
      %343 = vmatpush.msra.mxu0 0.0
      %344 = vmatpush.msra.mxu0 0.0
      %345 = vmatpush.msra.mxu0 0.0
      %346 = vmatpush.msra.mxu0 0.0
      %347 = vmatpush.msra.mxu0 0.0
      %348 = vmatpush.msra.mxu0 0.0
      %349 = vmatpush.msra.mxu0 0.0
      %350 = vmatpush.msra.mxu0 0.0
      %351 = vmatpush.msra.mxu0 0.0
      %352 = vmatpush.msra.mxu0 0.0
      %353 = vmatpush.msra.mxu0 0.0
      %354 = vmatpush.msra.mxu0 0.0
      %355 = vmatpush.msra.mxu0 0.0
      %356 = vmatpush.msra.mxu0 0.0
      %357 = vmatpush.msra.mxu0 %v340
      %358 = vmatmul.f32.gmra.mxu0 %v233
      %v359 = vpop.f32.mrf.mxu0
      %v360 = vadd.f32 0.0, %v359
      %361 = vdwg.mxu0
      %v362 = vmul.f32 %v360, %v262
      %v363 = vadd.f32 %v362, %v268
      %vm364 = vcmp.gt.f32.partialorder %v363, 0.0
      %v365 = vmul.f32 %v363, 0.01
      %v366 = vsel %vm364, %v363, %v365
      %v367 = vadd.f32 %v336, %v366
      %v368 = vmul.f32 %v367, 0.25
      %vm369 = vcmask 523264
      %370 = vst.msk [vmem:[%s226] sm:$0xff] %vm369, %v368
      %p371 = scmp.lt.s32.totalorder %s19, 1
      %s372 = scalar_select %p371, %s19, 1
      %p373 = scmp.lt.s32.totalorder %s20, 0
      %s374 = scalar_select %p373, %s20, 0
      %s375 = sadd.s32 %s374, %s372
      %s376 = smul.addr %s375, 8
      %s377 = scalar_lea.vmem %s4, %s376
      // Predicated region
      $region37: #{downsample_1.3} parent=35 // pred_check
        %p378 = pneg %p138
      $region38: #{downsample_1.3} parent=35 // pred_check_branch
        %380 = sbr.rel (%p378) target = $region40
      $region39: #{downsample_1.3} parent=35 // pred_region
        _
      $region40: #{downsample_1.3} parent=35 // pred_fallthru
        _
    $region36: #{downsample_1.3} parent=5 // pred_fallthru
      _
    %p381 = scmp.le.s32.totalorder 2, %s10
    // Predicated region
    $region41: #{downsample_1.3} parent=5 // pred_check
      %p382 = pneg %p381
    $region42: #{downsample_1.3} parent=5 // pred_check_branch
      %384 = sbr.rel (%p382) target = $region44
    $region43: #{downsample_1.3} parent=5 // pred_region
      %s385 = ssub.s32 %s10, 2
      // Predicated region
      $region45: #{downsample_1.3} parent=43 // pred_check
        %p386 = pneg %p144
      $region46: #{downsample_1.3} parent=43 // pred_check_branch
        %388 = sbr.rel (%p386) target = $region48
      $region47: #{downsample_1.3} parent=43 // pred_region
        %p389 = scmp.lt.s32.totalorder %s21, 1
        %s390 = scalar_select %p389, %s21, 1
        %p391 = scmp.lt.s32.totalorder %s22, 0
        %s392 = scalar_select %p391, %s22, 0
        %s393 = sadd.s32 %s392, %s390
        %s394 = smul.addr %s393, 8
        %s395 = scalar_lea.vmem %s4, %s394
      $region48: #{downsample_1.3} parent=43 // pred_fallthru
        _
    $region44: #{downsample_1.3} parent=5 // pred_fallthru
      _
  $region6: #{downsample_1.3} parent=0 // loop_footer
    %s14 = sadd.s32 1, %s10
  $region7: #{downsample_1.3} parent=0 // loop_footer_branch
    %9 = sbr.rel target = $region3
  $region8: #{downsample_1.3} parent=0 // loop_exit
    _

// kernel: downsample_1.2
$region0: #{downsample_1.2}
  #allocation0 [shape = 'u32[]', space=smem, size = 0x4, offset = 0x4, fixed_abs, tag = 'smem constant byte address 0x4 - core index']
  #allocation1 [shape = 'u32[72,128]{1,0:T(1,128)}', space=vmem, size = 0x9000, scoped, tag = 'internal scratch']
  %s0 = inlined_call_operand.vmem [shape: f32[2,4,256], index: 0, kind: input, shape index: {}]
  %s1 = inlined_call_operand.vmem [shape: f32[2,4,1], index: 1, kind: output, shape index: {0}]
  %s2 = inlined_call_operand.vmem [shape: f32[2,4,4], index: 2, kind: output, shape index: {1}]
  %3 = xla_tuple %s1, %s2
  %s4 = sld [smem:[#allocation0]]
  $region49: #{downsample_1.2} parent=0
    _
  %s6 = ssub.s32 1, %s4
  %s7 = scalar_select 0, %s6, %s4
  loop: start=0, step=1, limit=4
  $region2: #{downsample_1.2} parent=0 // loop_pre_header
    _
  $region3: #{downsample_1.2} parent=0 // loop_header
    %s9 = sphi 0, %s13
    %p10 = scmp.ge.s32.totalorder %s9, 4
    %s16 = sphi 0, %s28
    %s17 = sphi 0, %s24
    %s18 = sphi 0, %s16
    %s19 = sphi 0, %s17
    %s20 = sphi 0, %s18
    %s21 = sphi 0, %s19
    %s33 = sphi 0, %s35
    %s36 = sphi 0, %s33
    %s37 = sphi 0, %s36
    %s53 = sphi 0, %s37
    %s59 = sphi 0, %s61
    %s62 = sphi 0, %s59
    %s63 = sphi 0, %s62
    %s79 = sphi 0, %s63
    %s85 = sphi 0, %s87
    %s88 = sphi 0, %s85
    %s89 = sphi 0, %s88
    %s105 = sphi 0, %s89
  $region4: #{downsample_1.2} parent=0 // loop_header_branch
    %12 = sbr.rel (%p10) target = $region8
  $region5: #{downsample_1.2} parent=0 // loop_body
    %s14 = ssub.s32 %s9, 1
    %s15 = ssub.s32 %s9, 2
    %s22 = sadd.s32 1, %s17
    %p23 = scmp.ge.s32.totalorder %s22, 1
    %s24 = scalar_select %p23, 0, %s22
    %s25 = sadd.s32 1, %s16
    %s26 = scalar_select %p23, %s25, %s16
    %p27 = scmp.ge.s32.totalorder %s26, 2
    %s28 = scalar_select %p27, 0, %s26
    %s29 = ssub.s32 %s16, %s28
    %s30 = ssub.s32 %s17, %s24
    %s31 = sor.u32 %s29, %s30
    %p32 = scmp.eq.s32.totalorder %s31, 0
    %s34 = sadd.s32 %s33, 1
    %s35 = scalar_select %p32, %s33, %s34
    %p38 = pneg %p32
    %p39 = scmp.eq.s32.totalorder %s9, 1
    %p40 = por %p38, %p39
    %p41 = scmp.ne.s32.totalorder %s33, %s36
    %p42 = scmp.eq.s32.totalorder %s9, 0
    %p43 = por %p41, %p42
    %p44 = scmp.ne.s32.totalorder %s33, %s36
    %p45 = scmp.eq.s32.totalorder %s14, 1
    %p46 = por %p44, %p45
    %p47 = scmp.ne.s32.totalorder %s36, %s37
    %p48 = scmp.eq.s32.totalorder %s14, 0
    %p49 = por %p47, %p48
    %p50 = scmp.ne.s32.totalorder %s36, %s37
    %p51 = scmp.eq.s32.totalorder %s15, 1
    %p52 = por %p50, %p51
    %p54 = scmp.ne.s32.totalorder %s37, %s53
    %p55 = scmp.eq.s32.totalorder %s15, 0
    %p56 = por %p54, %p55
    %s57 = ssub.s32 %s16, %s28
    %p58 = scmp.eq.s32.totalorder %s57, 0
    %s60 = sadd.s32 %s59, 1
    %s61 = scalar_select %p58, %s59, %s60
    %p64 = pneg %p58
    %p65 = scmp.eq.s32.totalorder %s9, 1
    %p66 = por %p64, %p65
    %p67 = scmp.ne.s32.totalorder %s59, %s62
    %p68 = scmp.eq.s32.totalorder %s9, 0
    %p69 = por %p67, %p68
    %p70 = scmp.ne.s32.totalorder %s59, %s62
    %p71 = scmp.eq.s32.totalorder %s14, 1
    %p72 = por %p70, %p71
    %p73 = scmp.ne.s32.totalorder %s62, %s63
    %p74 = scmp.eq.s32.totalorder %s14, 0
    %p75 = por %p73, %p74
    %p76 = scmp.ne.s32.totalorder %s62, %s63
    %p77 = scmp.eq.s32.totalorder %s15, 1
    %p78 = por %p76, %p77
    %p80 = scmp.ne.s32.totalorder %s63, %s79
    %p81 = scmp.eq.s32.totalorder %s15, 0
    %p82 = por %p80, %p81
    %s83 = ssub.s32 %s16, %s28
    %p84 = scmp.eq.s32.totalorder %s83, 0
    %s86 = sadd.s32 %s85, 1
    %s87 = scalar_select %p84, %s85, %s86
    %p90 = pneg %p84
    %p91 = scmp.eq.s32.totalorder %s9, 1
    %p92 = por %p90, %p91
    %p93 = scmp.ne.s32.totalorder %s85, %s88
    %p94 = scmp.eq.s32.totalorder %s9, 0
    %p95 = por %p93, %p94
    %p96 = scmp.ne.s32.totalorder %s85, %s88
    %p97 = scmp.eq.s32.totalorder %s14, 1
    %p98 = por %p96, %p97
    %p99 = scmp.ne.s32.totalorder %s88, %s89
    %p100 = scmp.eq.s32.totalorder %s14, 0
    %p101 = por %p99, %p100
    %p102 = scmp.ne.s32.totalorder %s88, %s89
    %p103 = scmp.eq.s32.totalorder %s15, 1
    %p104 = por %p102, %p103
    %p106 = scmp.ne.s32.totalorder %s89, %s105
    %p107 = scmp.eq.s32.totalorder %s15, 0
    %p108 = por %p106, %p107
    %p109 = scmp.le.s32.totalorder 1, %s9
    %p110 = scmp.lt.s32.totalorder %s9, 3
    %p111 = pnand %p109, %p110
    %p112 = pneg %p111
    // Predicated region
    $region9: #{downsample_1.2} parent=5 // pred_check
      _
    $region10: #{downsample_1.2} parent=5 // pred_check_branch
      %114 = sbr.rel (%p111) target = $region12
    $region11: #{downsample_1.2} parent=5 // pred_region
      %s115 = ssub.s32 %s9, 1
    $region12: #{downsample_1.2} parent=5 // pred_fallthru
      _
    %p116 = scmp.lt.s32.totalorder %s9, 2
    // Predicated region
    $region13: #{downsample_1.2} parent=5 // pred_check
      %p117 = pneg %p116
    $region14: #{downsample_1.2} parent=5 // pred_check_branch
      %119 = sbr.rel (%p117) target = $region16
    $region15: #{downsample_1.2} parent=5 // pred_region
      // Predicated region
      $region17: #{downsample_1.2} parent=15 // pred_check
        %p120 = pneg %p43
      $region18: #{downsample_1.2} parent=15 // pred_check_branch
        %122 = sbr.rel (%p120) target = $region20
      $region19: #{downsample_1.2} parent=15 // pred_region
        %s123 = smul.u32 2, %s17
        %p124 = scmp.lt.s32.totalorder %s16, 1
        %s125 = scalar_select %p124, %s16, 1
        %p126 = scmp.lt.s32.totalorder %s123, 1
        %s127 = scalar_select %p126, %s123, 1
        %s128 = smul.addr %s125, 2
        %s129 = sadd.s32 %s127, %s128
        %s130 = smul.addr %s129, 4
        %s131 = scalar_lea.vmem %s0, %s130
        %s132 = smul.u32 2, %s17
      $region20: #{downsample_1.2} parent=15 // pred_fallthru
        _
    $region16: #{downsample_1.2} parent=5 // pred_fallthru
      _
    %p133 = scmp.le.s32.totalorder 1, %s9
    %p134 = scmp.lt.s32.totalorder %s9, 3
    %p135 = pnand %p133, %p134
    %p136 = pneg %p135
    // Predicated region
    $region21: #{downsample_1.2} parent=5 // pred_check
      _
    $region22: #{downsample_1.2} parent=5 // pred_check_branch
      %138 = sbr.rel (%p135) target = $region24
    $region23: #{downsample_1.2} parent=5 // pred_region
      %s139 = ssub.s32 %s9, 1
      %s140 = smul.u32 2, %s19
      %p141 = scmp.lt.s32.totalorder %s18, 1
      %s142 = scalar_select %p141, %s18, 1
      %p143 = scmp.lt.s32.totalorder %s140, 1
      %s144 = scalar_select %p143, %s140, 1
      %s145 = smul.addr %s142, 2
      %s146 = sadd.s32 %s144, %s145
      %s147 = smul.addr %s146, 4
      %s148 = scalar_lea.vmem %s0, %s147
      %p149 = pneg %p49
      %p150 = pneg %p46
      %p151 = pneg %p75
      %p152 = pneg %p72
      %p153 = scmp.lt.s32.totalorder %s18, 1
      %s154 = scalar_select %p153, %s18, 1
      %s155 = smul.addr %s154, 4
      %s156 = scalar_lea.vmem %s1, %s155
      %p157 = pneg %p101
      %p158 = pneg %p98
      %p159 = scmp.lt.s32.totalorder %s18, 1
      %s160 = scalar_select %p159, %s18, 1
      %s161 = smul.addr %s160, 4
      %s162 = scalar_lea.vmem %s2, %s161
      %s163 = smul.u32 2, %s19
      %p164 = scmp.lt.s32.totalorder %s18, 1
      %s165 = scalar_select %p164, %s18, 1
      %p166 = scmp.lt.s32.totalorder %s163, 1
      %s167 = scalar_select %p166, %s163, 1
      %s168 = smul.addr %s165, 2
      %s169 = sadd.s32 %s167, %s168
      %s170 = smul.addr %s169, 4
      %s171 = scalar_lea.vmem %s0, %s170
      %s172 = smul.u32 2, %s19
      %p173 = scmp.lt.s32.totalorder %s18, 1
      %s174 = scalar_select %p173, %s18, 1
      %s175 = smul.addr %s174, 4
      %s176 = scalar_lea.vmem %s1, %s175
      %p177 = scmp.lt.s32.totalorder %s18, 1
      %s178 = scalar_select %p177, %s18, 1
      %s179 = smul.addr %s178, 4
      %s180 = scalar_lea.vmem %s2, %s179
      %p181 = scmp.eq.s32.totalorder %s19, 0
      // Predicated region
      $region25: #{downsample_1.2} parent=23 // pred_check
        %p182 = pneg %p181
      $region26: #{downsample_1.2} parent=23 // pred_check_branch
        %184 = sbr.rel (%p182) target = $region28
      $region27: #{downsample_1.2} parent=23 // pred_region
        %vm185 = vcmask 3072
        %186 = vst.msk [vmem:[%s176] sm:$0xf] %vm185, 0.0
        %vm187 = vcmask 27648
        %188 = vst.msk [vmem:[%s180] sm:$0xf] %vm187, 0.0
      $region28: #{downsample_1.2} parent=23 // pred_fallthru
        _
      %v189 = vld [vmem:[%s171] sm:$0xff]
      %v190 = vld [vmem:[%s176] sm:$0xf]
      %192 = vst [vmem:[#allocation1] ss:$2 sm:$0xff] %v189
      %v193 = vld.sshfl [vmem:[#allocation1] sm:$0xff pattern:$0x75316420]
      %v194 = vld.sshfl [vmem:[#allocation1 + $0x8] sm:$0xff pattern:$0x75316420]
      %vm197 = vcmask 1043456
      %v198 = vsel %vm197, %v193, 0.0
      %v199 = vsel %vm197, %v194, 0.0
      %v200 = vadd.f32 %v198, %v199
      %201 = vadd.xlane.f32.xlu0 %v200
      %v202 = vpop.xlane.xlu0 %201
      %v203 = vadd.f32 %v190, %v202
      %vm204 = vcmask 3072
      %205 = vst.msk [vmem:[%s176] sm:$0xf] %vm204, %v203
      %v206 = vld [vmem:[%s180] sm:$0xf]
      %207 = vst [vmem:[#allocation1] ss:$2 sm:$0xff] %v189
      %v208 = vld.sshfl [vmem:[#allocation1] sm:$0xff pattern:$0x75316420]
      %v209 = vld.sshfl [vmem:[#allocation1 + $0x8] sm:$0xff pattern:$0x75316420]
      %212 = vst [vmem:[#allocation1] ss:$2 sm:$0xff] %v189
      %v213 = vld.sshfl [vmem:[#allocation1] sm:$0xff pattern:$0x75316420]
      %v214 = vld.sshfl [vmem:[#allocation1 + $0x8] sm:$0xff pattern:$0x75316420]
      %217 = vmatpush.xpose.msra.mxu0 0.0
      %218 = vmatpush.xpose.msra.mxu0 0.0
      %219 = vmatpush.xpose.msra.mxu0 0.0
      %220 = vmatpush.xpose.msra.mxu0 0.0
      %221 = vmatpush.xpose.msra.mxu0 0.0
      %222 = vmatpush.xpose.msra.mxu0 0.0
      %223 = vmatpush.xpose.msra.mxu0 0.0
      %224 = vmatpush.xpose.msra.mxu0 0.0
      %225 = vmatpush.xpose.msra.mxu0 0.0
      %226 = vmatpush.xpose.msra.mxu0 0.0
      %227 = vmatpush.xpose.msra.mxu0 0.0
      %228 = vmatpush.xpose.msra.mxu0 0.0
      %229 = vmatpush.xpose.msra.mxu0 0.0
      %230 = vmatpush.xpose.msra.mxu0 0.0
      %231 = vmatpush.xpose.msra.mxu0 0.0
      %232 = vmatpush.xpose.msra.mxu0 %v213
      %233 = vmatmul.f32.gmra.mxu0 %v208
      %v234 = vpop.f32.mrf.mxu0
      %v235 = vadd.f32 0.0, %v234
      %236 = vdwg.mxu0
      %237 = vmatpush.xpose.msra.mxu0 0.0
      %238 = vmatpush.xpose.msra.mxu0 0.0
      %239 = vmatpush.xpose.msra.mxu0 0.0
      %240 = vmatpush.xpose.msra.mxu0 0.0
      %241 = vmatpush.xpose.msra.mxu0 0.0
      %242 = vmatpush.xpose.msra.mxu0 0.0
      %243 = vmatpush.xpose.msra.mxu0 0.0
      %244 = vmatpush.xpose.msra.mxu0 0.0
      %245 = vmatpush.xpose.msra.mxu0 0.0
      %246 = vmatpush.xpose.msra.mxu0 0.0
      %247 = vmatpush.xpose.msra.mxu0 0.0
      %248 = vmatpush.xpose.msra.mxu0 0.0
      %249 = vmatpush.xpose.msra.mxu0 0.0
      %250 = vmatpush.xpose.msra.mxu0 0.0
      %251 = vmatpush.xpose.msra.mxu0 0.0
      %252 = vmatpush.xpose.msra.mxu0 %v214
      %253 = vmatmul.f32.gmra.mxu0 %v209
      %v254 = vpop.f32.mrf.mxu0
      %v255 = vadd.f32 %v235, %v254
      %256 = vdwg.mxu0
      %v257 = vadd.f32 %v206, %v255
      %vm258 = vcmask 27648
      %259 = vst.msk [vmem:[%s180] sm:$0xf] %vm258, %v257
      %p260 = scmp.lt.s32.totalorder %s18, 1
      %s261 = scalar_select %p260, %s18, 1
      %s262 = smul.addr %s261, 4
      %s263 = scalar_lea.vmem %s1, %s262
      %p264 = scmp.lt.s32.totalorder %s18, 1
      %s265 = scalar_select %p264, %s18, 1
      %s266 = smul.addr %s265, 4
      %s267 = scalar_lea.vmem %s2, %s266
      // Predicated region
      $region29: #{downsample_1.2} parent=23 // pred_check
        %p268 = pneg %p72
      $region30: #{downsample_1.2} parent=23 // pred_check_branch
        %270 = sbr.rel (%p268) target = $region32
      $region31: #{downsample_1.2} parent=23 // pred_region
        _
      $region32: #{downsample_1.2} parent=23 // pred_fallthru
        _
      // Predicated region
      $region33: #{downsample_1.2} parent=23 // pred_check
        %p271 = pneg %p98
      $region34: #{downsample_1.2} parent=23 // pred_check_branch
        %273 = sbr.rel (%p271) target = $region36
      $region35: #{downsample_1.2} parent=23 // pred_region
        _
      $region36: #{downsample_1.2} parent=23 // pred_fallthru
        _
    $region24: #{downsample_1.2} parent=5 // pred_fallthru
      _
    %p274 = scmp.le.s32.totalorder 2, %s9
    // Predicated region
    $region37: #{downsample_1.2} parent=5 // pred_check
      %p275 = pneg %p274
    $region38: #{downsample_1.2} parent=5 // pred_check_branch
      %277 = sbr.rel (%p275) target = $region40
    $region39: #{downsample_1.2} parent=5 // pred_region
      %s278 = ssub.s32 %s9, 2
      // Predicated region
      $region41: #{downsample_1.2} parent=39 // pred_check
        %p279 = pneg %p78
      $region42: #{downsample_1.2} parent=39 // pred_check_branch
        %281 = sbr.rel (%p279) target = $region44
      $region43: #{downsample_1.2} parent=39 // pred_region
        %p282 = scmp.lt.s32.totalorder %s20, 1
        %s283 = scalar_select %p282, %s20, 1
        %s284 = smul.addr %s283, 4
        %s285 = scalar_lea.vmem %s1, %s284
      $region44: #{downsample_1.2} parent=39 // pred_fallthru
        _
      // Predicated region
      $region45: #{downsample_1.2} parent=39 // pred_check
        %p286 = pneg %p104
      $region46: #{downsample_1.2} parent=39 // pred_check_branch
        %288 = sbr.rel (%p286) target = $region48
      $region47: #{downsample_1.2} parent=39 // pred_region
        %p289 = scmp.lt.s32.totalorder %s20, 1
        %s290 = scalar_select %p289, %s20, 1
        %s291 = smul.addr %s290, 4
        %s292 = scalar_lea.vmem %s2, %s291
      $region48: #{downsample_1.2} parent=39 // pred_fallthru
        _
    $region40: #{downsample_1.2} parent=5 // pred_fallthru
      _
  $region6: #{downsample_1.2} parent=0 // loop_footer
    %s13 = sadd.s32 1, %s9
  $region7: #{downsample_1.2} parent=0 // loop_footer_branch
    %8 = sbr.rel target = $region3
  $region8: #{downsample_1.2} parent=0 // loop_exit
    _

</llo_original>
